<compile_context>
chip_gen: v7x
topology: tpu7x:2x2x1
jax: 0.10.0
libtpu: 0.0.40
codegen_flags: <defaults>
</compile_context>

<pallas_src>
import jax
import jax.numpy as jnp
from jax.experimental import pallas as pl
from jax.experimental.pallas import tpu as pltpu


def _round_up(x, m):
    return ((x + m - 1) // m) * m


def mlp_kernel(ids_ref, num_ref,
               w1n_ref, embw1_ref, b1_ref,
               w2_ref, b2_ref, w3_ref, b3_ref,
               out_ref):
    """One batch tile, batch on the lane axis.

    Shapes inside the kernel (TB = tile_b lanes):
      ids   [1, TB] int32        num   [f_num, TB] bf16
      w1n   [H, f_num] bf16      embw1 [H, S] bf16  (= (emb_tbl @ w1_emb)^T)
      w2    [H, H]   bf16        w3    [O, H] bf16
      b1,b2 [H, 1]   f32         b3    [O, 1] f32
      out   [O, TB]  f32
    """
    n_stocks = embw1_ref.shape[1]
    tile_b = ids_ref.shape[1]
    cdt = num_ref.dtype                                                 # bf16

    # Fused embedding gather as a one-hot matmul against the resident,
    # pre-folded [H, S] operand.  int32 compare (no bf16 VPU dependence),
    # cast only the MXU operand.  Out-of-range ids give a zero embedding.
    ids = ids_ref[...]                                                  # [1, TB]
    iota = jax.lax.broadcasted_iota(jnp.int32, (n_stocks, tile_b), 0)   # [S, TB]
    onehot = (iota == ids).astype(cdt)                                  # [S, TB]

    # Layer 1 + ReLU: two MXU matmuls with N = tile_b lanes, f32 accumulation.
    h1 = jnp.dot(w1n_ref[...], num_ref[...], preferred_element_type=jnp.float32)
    h1 = h1 + jnp.dot(embw1_ref[...], onehot, preferred_element_type=jnp.float32)
    h1 = jnp.maximum(h1 + b1_ref[...], 0.0)                             # [H, TB] f32

    # Layer 2 + ReLU
    h2 = jnp.dot(w2_ref[...], h1.astype(cdt), preferred_element_type=jnp.float32)
    h2 = jnp.maximum(h2 + b2_ref[...], 0.0)                             # [H, TB] f32

    # Layer 3 (linear) -> lane-dense store.
    h3 = jnp.dot(w3_ref[...], h2.astype(cdt), preferred_element_type=jnp.float32)
    out_ref[...] = (h3 + b3_ref[...]).astype(out_ref.dtype)             # [O, TB]


def mlp_forward(numerical_data, stock_ids, params, *, block_b=2048,
                compute_dtype=jnp.bfloat16):
    """numerical_data: [B, num_numerical] f32, stock_ids: [B] int -> [B, out_dim] f32."""
    B, f_num = numerical_data.shape

    emb_tbl = params["embedding"]                              # [S, E] f32
    w1 = params["w1"]                                          # [F+E, H] f32
    hidden = params["w2"].shape[0]
    out_dim = params["w3"].shape[1]
    n_stocks = emb_tbl.shape[0]

    # Weight prep (layout plumbing; one-off / constant-folded under jit):
    #  fold emb table into layer 1 and transpose everything so the batch is
    #  the matmul N-dim (lane axis).
    w1n_t = w1[:f_num, :].T.astype(compute_dtype)                       # [H, F]
    embw1_t = jnp.dot(emb_tbl, w1[f_num:, :]).T.astype(compute_dtype)   # [H, S]
    w2_t = params["w2"].T.astype(compute_dtype)                         # [H, H]
    w3_t = params["w3"].T.astype(compute_dtype)                         # [O, H]
    b1_t = params["b1"].reshape(hidden, 1).astype(jnp.float32)          # [H, 1]
    b2_t = params["b2"].reshape(hidden, 1).astype(jnp.float32)          # [H, 1]
    b3_t = params["b3"].reshape(out_dim, 1).astype(jnp.float32)         # [O, 1]

    # Batch tiling: batch on lanes -> tiles are multiples of 128.
    tile_b = min(block_b, _round_up(B, 128))
    if B > 128:  # keep >=2 grid steps so both v7x TensorCores get work
        tile_b = min(tile_b, _round_up((B + 1) // 2, 128))
    tile_b = max(128, _round_up(tile_b, 128))
    b_pad = _round_up(B, tile_b)
    grid = (b_pad // tile_b,)

    # Lane-dense inputs: [f_num, B] numerical, [1, B] ids (padded lanes use id 0
    # and zero features; padded columns are sliced off below).
    num_t = numerical_data.astype(compute_dtype).T                      # [F, B]
    ids_t = stock_ids.astype(jnp.int32).reshape(1, B)                   # [1, B]
    if b_pad != B:
        num_t = jnp.pad(num_t, ((0, 0), (0, b_pad - B)))
        ids_t = jnp.pad(ids_t, ((0, 0), (0, b_pad - B)))

    resident = lambda a: pl.BlockSpec(a.shape, lambda i: (0, 0))
    in_specs = [
        pl.BlockSpec((1, tile_b), lambda i: (0, i)),                    # ids
        pl.BlockSpec((f_num, tile_b), lambda i: (0, i)),                # numerical
        resident(w1n_t), resident(embw1_t), resident(b1_t),
        resident(w2_t), resident(b2_t),
        resident(w3_t), resident(b3_t),
    ]
    out_specs = pl.BlockSpec((out_dim, tile_b), lambda i: (0, i))

    itemsize = jnp.dtype(compute_dtype).itemsize
    flops = 2 * b_pad * (f_num * hidden + n_stocks * hidden
                         + hidden * hidden + hidden * out_dim)
    bytes_accessed = (
        b_pad * 4                                                       # ids
        + b_pad * f_num * itemsize                                      # numerical
        + (w1n_t.size + embw1_t.size + w2_t.size + w3_t.size) * itemsize
        + (b1_t.size + b2_t.size + b3_t.size) * 4
        + b_pad * out_dim * 4)                                          # output
    cost = pl.CostEstimate(flops=int(flops), transcendentals=0,
                           bytes_accessed=int(bytes_accessed))

    out_t = pl.pallas_call(
        mlp_kernel,
        out_shape=jax.ShapeDtypeStruct((out_dim, b_pad), jnp.float32),
        grid=grid,
        in_specs=in_specs,
        out_specs=out_specs,
        compiler_params=pltpu.CompilerParams(
            dimension_semantics=("parallel",)),
        cost_estimate=cost,
    )(ids_t, num_t, w1n_t, embw1_t, b1_t, w2_t, b2_t, w3_t, b3_t)

    return out_t[:, :B].T                                               # [B, O]


def init_params(key, num_numerical_features, num_stocks, embedding_dim,
                hidden_size, output_size):
    ks = jax.random.split(key, 4)
    in1 = num_numerical_features + embedding_dim

    def lin(k, fan_in, fan_out):
        # PyTorch-style uniform init, weight stored as [in, out]
        bound = 1.0 / jnp.sqrt(fan_in)
        kw, kb = jax.random.split(k)
        w = jax.random.uniform(kw, (fan_in, fan_out), jnp.float32, -bound, bound)
        b = jax.random.uniform(kb, (1, fan_out), jnp.float32, -bound, bound)
        return w, b

    embedding = jax.random.normal(ks[0], (num_stocks, embedding_dim), jnp.float32)
    w1, b1 = lin(ks[1], in1, hidden_size)
    w2, b2 = lin(ks[2], hidden_size, hidden_size)
    w3, b3 = lin(ks[3], hidden_size, output_size)
    return {"embedding": embedding, "w1": w1, "b1": b1,
            "w2": w2, "b2": b2, "w3": w3, "b3": b3}


def _reference(numerical_data, stock_ids, params, compute_dtype=jnp.bfloat16):
    """Plain-JAX mirror of the kernel math (same emb-fold, bf16 casts, f32 acc)."""
    f_num = numerical_data.shape[1]
    cdt = compute_dtype
    w1 = params["w1"]
    embw1 = jnp.dot(params["embedding"], w1[f_num:, :]).astype(cdt)     # [S, H]
    h1 = (jnp.dot(numerical_data.astype(cdt), w1[:f_num, :].astype(cdt),
                  preferred_element_type=jnp.float32)
          + jnp.take(embw1, stock_ids, axis=0).astype(jnp.float32)
          + params["b1"])
    h1 = jnp.maximum(h1, 0.0)
    h2 = jnp.dot(h1.astype(cdt), params["w2"].astype(cdt),
                 preferred_element_type=jnp.float32) + params["b2"]
    h2 = jnp.maximum(h2, 0.0)
    return jnp.dot(h2.astype(cdt), params["w3"].astype(cdt),
                   preferred_element_type=jnp.float32) + params["b3"]


if __name__ == "__main__":
    num_numerical_features = 10
    num_stocks = 50
    embedding_dim = 6
    hidden_size = 32
    output_size = 1

    key = jax.random.PRNGKey(0)
    k_params, k_num, k_ids = jax.random.split(key, 3)
    params = init_params(k_params, num_numerical_features, num_stocks,
                         embedding_dim, hidden_size, output_size)

    # --- small check (single tile, batch padded to 128 lanes) -------------------
    batch = 8
    numerical_data = jax.random.normal(
        k_num, (batch, num_numerical_features), jnp.float32)
    stock_ids = jax.random.randint(k_ids, (batch,), 0, num_stocks, jnp.int32)

    out = mlp_forward(numerical_data, stock_ids, params)
    jax.block_until_ready(out)
    ref = _reference(numerical_data, stock_ids, params)
    assert out.shape == (batch, output_size)
    assert jnp.allclose(out, ref, atol=1e-3, rtol=1e-3), "mismatch (batch=8)"

    # --- larger check: exercises a multi-step grid (2 tiles) and padding --------
    batch2 = 200
    k_num2, k_ids2 = jax.random.split(jax.random.PRNGKey(1))
    numerical_data2 = jax.random.normal(
        k_num2, (batch2, num_numerical_features), jnp.float32)
    stock_ids2 = jax.random.randint(k_ids2, (batch2,), 0, num_stocks, jnp.int32)

    out2 = mlp_forward(numerical_data2, stock_ids2, params)
    jax.block_until_ready(out2)
    ref2 = _reference(numerical_data2, stock_ids2, params)
    assert out2.shape == (batch2, output_size)
    assert jnp.allclose(out2, ref2, atol=1e-3, rtol=1e-3), "mismatch (batch=200)"

    print("KERNEL_OK")
</pallas_src>

<mosaic_0001>
module attributes {stable_mosaic.version = 11 : i64} {
  func.func @mlp_kernel(%arg0: i32, %arg1: memref<1x128xi32, #tpu.memory_space<vmem>>, %arg2: memref<10x128xbf16, #tpu.memory_space<vmem>>, %arg3: memref<32x10xbf16, #tpu.memory_space<vmem>>, %arg4: memref<32x50xbf16, #tpu.memory_space<vmem>>, %arg5: memref<32x1xf32, #tpu.memory_space<vmem>>, %arg6: memref<32x32xbf16, #tpu.memory_space<vmem>>, %arg7: memref<32x1xf32, #tpu.memory_space<vmem>>, %arg8: memref<1x32xbf16, #tpu.memory_space<vmem>>, %arg9: memref<1x1xf32, #tpu.memory_space<vmem>>, %arg10: memref<1x128xf32, #tpu.memory_space<vmem>>) attributes {dimension_semantics = [#tpu.dimension_semantics<parallel>], iteration_bounds = array<i64: 1>, scalar_prefetch = 0 : i64, scratch_operands = 0 : i64, tpu.core_type = #tpu.core_type<tc>, window_params = [{transform_indices = @transform_0, window_bounds = array<i64: 1, 128>}, {transform_indices = @transform_1, window_bounds = array<i64: 10, 128>}, {pipeline_mode = #tpu.pipeline_mode<synchronous>, transform_indices = @transform_2, window_bounds = array<i64: 32, 10>}, {pipeline_mode = #tpu.pipeline_mode<synchronous>, transform_indices = @transform_3, window_bounds = array<i64: 32, 50>}, {pipeline_mode = #tpu.pipeline_mode<synchronous>, transform_indices = @transform_4, window_bounds = array<i64: 32, 1>}, {pipeline_mode = #tpu.pipeline_mode<synchronous>, transform_indices = @transform_5, window_bounds = array<i64: 32, 32>}, {pipeline_mode = #tpu.pipeline_mode<synchronous>, transform_indices = @transform_6, window_bounds = array<i64: 32, 1>}, {pipeline_mode = #tpu.pipeline_mode<synchronous>, transform_indices = @transform_7, window_bounds = array<i64: 1, 32>}, {pipeline_mode = #tpu.pipeline_mode<synchronous>, transform_indices = @transform_8, window_bounds = array<i64: 1, 1>}, {transform_indices = @transform_9, window_bounds = array<i64: 1, 128>}]} {
    %c0 = arith.constant 0 : index
    %c0_0 = arith.constant 0 : index
    %0 = vector.load %arg1[%c0, %c0_0] : memref<1x128xi32, #tpu.memory_space<vmem>>, vector<1x128xi32>
    %1 = tpu.iota {dimensions = array<i32: 0>} : vector<50x128xi32>
    %2 = vector.broadcast %0 : vector<1x128xi32> to vector<50x128xi32>
    %3 = arith.cmpi eq, %1, %2 : vector<50x128xi32>
    %4 = arith.extui %3 : vector<50x128xi1> to vector<50x128xi32>
    %5 = arith.sitofp %4 : vector<50x128xi32> to vector<50x128xf32>
    %6 = arith.truncf %5 : vector<50x128xf32> to vector<50x128xbf16>
    %c0_1 = arith.constant 0 : index
    %c0_2 = arith.constant 0 : index
    %7 = vector.load %arg3[%c0_1, %c0_2] : memref<32x10xbf16, #tpu.memory_space<vmem>>, vector<32x10xbf16>
    %c0_3 = arith.constant 0 : index
    %c0_4 = arith.constant 0 : index
    %8 = vector.load %arg2[%c0_3, %c0_4] : memref<10x128xbf16, #tpu.memory_space<vmem>>, vector<10x128xbf16>
    %cst = arith.constant dense<0.000000e+00> : vector<32x128xf32>
    %9 = tpu.matmul %7, %8, %cst {dimension_numbers = #tpu.dot_dimension_numbers<[1], [0], [0], [1], [0, 0, 1, 1], [], []>} : vector<32x10xbf16>, vector<10x128xbf16>, vector<32x128xf32> -> vector<32x128xf32>
    %c0_5 = arith.constant 0 : index
    %c0_6 = arith.constant 0 : index
    %10 = vector.load %arg4[%c0_5, %c0_6] : memref<32x50xbf16, #tpu.memory_space<vmem>>, vector<32x50xbf16>
    %cst_7 = arith.constant dense<0.000000e+00> : vector<32x128xf32>
    %11 = tpu.matmul %10, %6, %cst_7 {dimension_numbers = #tpu.dot_dimension_numbers<[1], [0], [0], [1], [0, 0, 1, 1], [], []>} : vector<32x50xbf16>, vector<50x128xbf16>, vector<32x128xf32> -> vector<32x128xf32>
    %12 = arith.addf %9, %11 : vector<32x128xf32>
    %c0_8 = arith.constant 0 : index
    %c0_9 = arith.constant 0 : index
    %13 = vector.load %arg5[%c0_8, %c0_9] : memref<32x1xf32, #tpu.memory_space<vmem>>, vector<32x1xf32>
    %14 = vector.broadcast %13 : vector<32x1xf32> to vector<32x128xf32>
    %15 = arith.addf %12, %14 : vector<32x128xf32>
    %cst_10 = arith.constant 0.000000e+00 : f32
    %16 = vector.broadcast %cst_10 : f32 to vector<32x128xf32>
    %17 = arith.maximumf %15, %16 : vector<32x128xf32>
    %c0_11 = arith.constant 0 : index
    %c0_12 = arith.constant 0 : index
    %18 = vector.load %arg6[%c0_11, %c0_12] : memref<32x32xbf16, #tpu.memory_space<vmem>>, vector<32x32xbf16>
    %19 = arith.truncf %17 : vector<32x128xf32> to vector<32x128xbf16>
    %cst_13 = arith.constant dense<0.000000e+00> : vector<32x128xf32>
    %20 = tpu.matmul %18, %19, %cst_13 {dimension_numbers = #tpu.dot_dimension_numbers<[1], [0], [0], [1], [0, 0, 1, 1], [], []>} : vector<32x32xbf16>, vector<32x128xbf16>, vector<32x128xf32> -> vector<32x128xf32>
    %c0_14 = arith.constant 0 : index
    %c0_15 = arith.constant 0 : index
    %21 = vector.load %arg7[%c0_14, %c0_15] : memref<32x1xf32, #tpu.memory_space<vmem>>, vector<32x1xf32>
    %22 = vector.broadcast %21 : vector<32x1xf32> to vector<32x128xf32>
    %23 = arith.addf %20, %22 : vector<32x128xf32>
    %cst_16 = arith.constant 0.000000e+00 : f32
    %24 = vector.broadcast %cst_16 : f32 to vector<32x128xf32>
    %25 = arith.maximumf %23, %24 : vector<32x128xf32>
    %c0_17 = arith.constant 0 : index
    %c0_18 = arith.constant 0 : index
    %26 = vector.load %arg8[%c0_17, %c0_18] : memref<1x32xbf16, #tpu.memory_space<vmem>>, vector<1x32xbf16>
    %27 = arith.truncf %25 : vector<32x128xf32> to vector<32x128xbf16>
    %cst_19 = arith.constant dense<0.000000e+00> : vector<1x128xf32>
    %28 = tpu.matmul %26, %27, %cst_19 {dimension_numbers = #tpu.dot_dimension_numbers<[1], [0], [0], [1], [0, 0, 1, 1], [], []>} : vector<1x32xbf16>, vector<32x128xbf16>, vector<1x128xf32> -> vector<1x128xf32>
    %c0_20 = arith.constant 0 : index
    %c0_21 = arith.constant 0 : index
    %29 = vector.load %arg9[%c0_20, %c0_21] : memref<1x1xf32, #tpu.memory_space<vmem>>, vector<1x1xf32>
    %30 = vector.broadcast %29 : vector<1x1xf32> to vector<1x128xf32>
    %31 = arith.addf %28, %30 : vector<1x128xf32>
    %c0_22 = arith.constant 0 : index
    %c0_23 = arith.constant 0 : index
    %32 = vector.load %arg10[%c0_22, %c0_23] : memref<1x128xf32, #tpu.memory_space<vmem>>, vector<1x128xf32>
    tpu.vector_store %arg10[%c0_22, %c0_23], %31 {strides = array<i32>} : memref<1x128xf32, #tpu.memory_space<vmem>>, vector<1x128xf32>,
    return
  }
  func.func @transform_0(%arg0: i32) -> (i32, i32) {
    %c0_i32 = arith.constant 0 : i32
    %c0_i32_0 = arith.constant 0 : i32
    return %c0_i32, %arg0 : i32, i32
  }
  func.func @transform_1(%arg0: i32) -> (i32, i32) {
    %c0_i32 = arith.constant 0 : i32
    %c0_i32_0 = arith.constant 0 : i32
    return %c0_i32, %arg0 : i32, i32
  }
  func.func @transform_2(%arg0: i32) -> (i32, i32) {
    %c0_i32 = arith.constant 0 : i32
    %c0_i32_0 = arith.constant 0 : i32
    %c0_i32_1 = arith.constant 0 : i32
    return %c0_i32, %c0_i32_0 : i32, i32
  }
  func.func @transform_3(%arg0: i32) -> (i32, i32) {
    %c0_i32 = arith.constant 0 : i32
    %c0_i32_0 = arith.constant 0 : i32
    %c0_i32_1 = arith.constant 0 : i32
    return %c0_i32, %c0_i32_0 : i32, i32
  }
  func.func @transform_4(%arg0: i32) -> (i32, i32) {
    %c0_i32 = arith.constant 0 : i32
    %c0_i32_0 = arith.constant 0 : i32
    %c0_i32_1 = arith.constant 0 : i32
    return %c0_i32, %c0_i32_0 : i32, i32
  }
  func.func @transform_5(%arg0: i32) -> (i32, i32) {
    %c0_i32 = arith.constant 0 : i32
    %c0_i32_0 = arith.constant 0 : i32
    %c0_i32_1 = arith.constant 0 : i32
    return %c0_i32, %c0_i32_0 : i32, i32
  }
  func.func @transform_6(%arg0: i32) -> (i32, i32) {
    %c0_i32 = arith.constant 0 : i32
    %c0_i32_0 = arith.constant 0 : i32
    %c0_i32_1 = arith.constant 0 : i32
    return %c0_i32, %c0_i32_0 : i32, i32
  }
  func.func @transform_7(%arg0: i32) -> (i32, i32) {
    %c0_i32 = arith.constant 0 : i32
    %c0_i32_0 = arith.constant 0 : i32
    %c0_i32_1 = arith.constant 0 : i32
    return %c0_i32, %c0_i32_0 : i32, i32
  }
  func.func @transform_8(%arg0: i32) -> (i32, i32) {
    %c0_i32 = arith.constant 0 : i32
    %c0_i32_0 = arith.constant 0 : i32
    %c0_i32_1 = arith.constant 0 : i32
    return %c0_i32, %c0_i32_0 : i32, i32
  }
  func.func @transform_9(%arg0: i32) -> (i32, i32) {
    %c0_i32 = arith.constant 0 : i32
    %c0_i32_0 = arith.constant 0 : i32
    return %c0_i32, %arg0 : i32, i32
  }
}

</mosaic_0001>

<llo_original>
// kernel: tpu_custom_call.1
$region0: #{tpu_custom_call.1}
  #allocation0 [shape = 'u32[]', space=smem, size = 0x4, offset = 0x4, fixed_abs, tag = 'smem constant byte address 0x4 - core index']
  #allocation1 [shape = 'u32[144,128]{1,0:T(1,128)}', space=vmem, size = 0x12000, scoped, tag = 'internal scratch']
  #allocation2 [shape = 'f32[1,1]{1,0:T(1,128)S(1)}', space=vmem, size = 0x200, scoped, tag = 'scoped memory for tpu_custom_call.1']
  %s0 = inlined_call_operand.vmem [shape: s32[1,128], index: 0, kind: input, shape index: {}]
  %s1 = inlined_call_operand.vmem [shape: bf16[10,128], index: 1, kind: input, shape index: {}]
  %s2 = inlined_call_operand.vmem [shape: bf16[32,10], index: 2, kind: input, shape index: {}]
  %s3 = inlined_call_operand.vmem [shape: bf16[32,50], index: 3, kind: input, shape index: {}]
  %s4 = inlined_call_operand.vmem [shape: f32[32,1], index: 4, kind: input, shape index: {}]
  %s5 = inlined_call_operand.vmem [shape: bf16[32,32], index: 5, kind: input, shape index: {}]
  %s6 = inlined_call_operand.vmem [shape: f32[32,1], index: 6, kind: input, shape index: {}]
  %s7 = inlined_call_operand.vmem [shape: bf16[1,32], index: 7, kind: input, shape index: {}]
  %s8 = inlined_call_operand.<no memory space> [shape: f32[1,1], index: 8, kind: input, shape index: {}]
  %s9 = inlined_call_operand.hbm [shape: f32[1,128], index: 9, kind: output, shape index: {}]
  %s10 = sld [smem:[#allocation0]]
  $region46: #{tpu_custom_call.1} parent=0
    _
  %s12 = ssub.s32 1, %s10
  %s13 = scalar_select 0, %s12, %s10
  %v14 = vstv %s8
  %15 = vst [vmem:[#allocation2] sm:$0x1] %v14
  $region1: #{tpu_custom_call.1} parent=0
    #allocation3 [shape = 'u8[512]{0}', space=vmem, size = 0x400, scoped, tag = 'output window, operand 0, single buffered']
    #allocation4 [shape = 's32[1]{0}', space=sflag, size = 0x4, scoped, tag = 'scoped memory for tpu_custom_call.1']
    %16 = vsyncpa [#allocation4], 0
    // Predicated region
    $region2: #{tpu_custom_call.1} parent=1 // pred_check
      _
    $region3: #{tpu_custom_call.1} parent=1 // pred_check_branch
      %18 = sbr.rel (0) target = $region5
    $region4: #{tpu_custom_call.1} parent=1 // pred_region
      _
    $region5: #{tpu_custom_call.1} parent=1 // pred_fallthru
      _
    // Predicated region
    $region6: #{tpu_custom_call.1} parent=1 // pred_check
      _
    $region7: #{tpu_custom_call.1} parent=1 // pred_check_branch
      %20 = sbr.rel (0) target = $region9
    $region8: #{tpu_custom_call.1} parent=1 // pred_region
      _
    $region9: #{tpu_custom_call.1} parent=1 // pred_fallthru
      _
    // Predicated region
    $region10: #{tpu_custom_call.1} parent=1 // pred_check
      _
    $region11: #{tpu_custom_call.1} parent=1 // pred_check_branch
      %22 = sbr.rel (0) target = $region13
    $region12: #{tpu_custom_call.1} parent=1 // pred_region
      _
    $region13: #{tpu_custom_call.1} parent=1 // pred_fallthru
      _
    // Predicated region
    $region14: #{tpu_custom_call.1} parent=1 // pred_check
      _
    $region15: #{tpu_custom_call.1} parent=1 // pred_check_branch
      %24 = sbr.rel (0) target = $region17
    $region16: #{tpu_custom_call.1} parent=1 // pred_region
      _
    $region17: #{tpu_custom_call.1} parent=1 // pred_fallthru
      _
    // Predicated region
    $region18: #{tpu_custom_call.1} parent=1 // pred_check
      _
    $region19: #{tpu_custom_call.1} parent=1 // pred_check_branch
      %26 = sbr.rel (0) target = $region21
    $region20: #{tpu_custom_call.1} parent=1 // pred_region
      _
    $region21: #{tpu_custom_call.1} parent=1 // pred_fallthru
      _
    // Predicated region
    $region22: #{tpu_custom_call.1} parent=1 // pred_check
      _
    $region23: #{tpu_custom_call.1} parent=1 // pred_check_branch
      %28 = sbr.rel (0) target = $region25
    $region24: #{tpu_custom_call.1} parent=1 // pred_region
      _
    $region25: #{tpu_custom_call.1} parent=1 // pred_fallthru
      _
    // Predicated region
    $region26: #{tpu_custom_call.1} parent=1 // pred_check
      _
    $region27: #{tpu_custom_call.1} parent=1 // pred_check_branch
      %30 = sbr.rel (0) target = $region29
    $region28: #{tpu_custom_call.1} parent=1 // pred_region
      _
    $region29: #{tpu_custom_call.1} parent=1 // pred_fallthru
      _
    // Predicated region
    $region30: #{tpu_custom_call.1} parent=1 // pred_check
      _
    $region31: #{tpu_custom_call.1} parent=1 // pred_check_branch
      %32 = sbr.rel (0) target = $region33
    $region32: #{tpu_custom_call.1} parent=1 // pred_region
      _
    $region33: #{tpu_custom_call.1} parent=1 // pred_fallthru
      _
    // Predicated region
    $region34: #{tpu_custom_call.1} parent=1 // pred_check
      _
    $region35: #{tpu_custom_call.1} parent=1 // pred_check_branch
      %34 = sbr.rel (0) target = $region37
    $region36: #{tpu_custom_call.1} parent=1 // pred_region
      _
    $region37: #{tpu_custom_call.1} parent=1 // pred_fallthru
      _
    %v36 = vld [vmem:[%s0] sm:$0x1]
    %v37 = vlaneseq
    %v38 = vshrl.u32 %v37, 7
    %v39 = vadd.s32 %v38, 8
    %v40 = vadd.s32 %v38, 16
    %v41 = vadd.s32 %v38, 24
    %v42 = vadd.s32 %v38, 32
    %v43 = vadd.s32 %v38, 40
    %v44 = vadd.s32 %v38, 48
    %v45 = vlaneseq
    %v46 = vshrl.u32 %v45, 7
    %v47 = vsub.s32 0, %v46
    %v48 = vrot.slane %v36, %v47
    %vm49 = vcmp.eq.s32.totalorder %v38, %v48
    %vm50 = vcmp.eq.s32.totalorder %v39, %v48
    %vm51 = vcmp.eq.s32.totalorder %v40, %v48
    %vm52 = vcmp.eq.s32.totalorder %v41, %v48
    %vm53 = vcmp.eq.s32.totalorder %v42, %v48
    %vm54 = vcmp.eq.s32.totalorder %v43, %v48
    %vm55 = vcmp.eq.s32.totalorder %v44, %v48
    %v56 = vsel %vm49, 1, 0
    %v57 = vsel %vm50, 1, 0
    %v58 = vsel %vm51, 1, 0
    %v59 = vsel %vm52, 1, 0
    %v60 = vsel %vm53, 1, 0
    %v61 = vsel %vm54, 1, 0
    %v62 = vsel %vm55, 1, 0
    %v63 = vcvt.s32.f32 %v56
    %v64 = vcvt.s32.f32 %v57
    %v65 = vcvt.s32.f32 %v58
    %v66 = vcvt.s32.f32 %v59
    %v67 = vcvt.s32.f32 %v60
    %v68 = vcvt.s32.f32 %v61
    %v69 = vcvt.s32.f32 %v62
    %v70 = vpack.c.bf16 %v64, %v63
    %v71 = vpack.c.bf16 %v66, %v65
    %v72 = vpack.c.bf16 %v68, %v67
    %v73 = vpack.c.bf16 %v69, %v69
    %v74 = vld [vmem:[%s2] sm:$0xf]
    %v75 = vld [vmem:[%s2 + $0x4] sm:$0xf]
    %v76 = vld [vmem:[%s2 + $0x8] sm:$0xf]
    %v77 = vld [vmem:[%s2 + $0xc] sm:$0xf]
    %v78 = vld [vmem:[%s1] sm:$0xf]
    %v79 = vld [vmem:[%s1 + $0x4] sm:$0x1]
    %v80 = vld [vmem:[%s3] sm:$0xf]
    %v81 = vld [vmem:[%s3 + $0x4] sm:$0xf]
    %v82 = vld [vmem:[%s3 + $0x8] sm:$0xf]
    %v83 = vld [vmem:[%s3 + $0xc] sm:$0xf]
    %v88 = vunpack.c.l.b16 %v80
    %v89 = vunpack.c.l.b16 %v81
    %v90 = vunpack.c.l.b16 %v82
    %v91 = vunpack.c.l.b16 %v83
    %v92 = vpack.c.b16 %v89, %v88
    %v93 = vpack.c.b16 %v91, %v90
    %vm94 = vcmask 408576
    %v96 = vsel %vm94, %v92, 0
    %v99 = vsel %vm94, %v93, 0
    %vm101 = vcmask 1040384
    %v103 = vsel %vm101, %v73, 0
    %105 = vmatprep.subr.bf16.mxu0 0
    %106 = vmatpush1.bf16.msra.mxu0 %v70
    %107 = vmatprep.subr.bf16.mxu0 0
    %108 = vmatpush1.bf16.msra.mxu0 %v71
    %109 = vmatprep.subr.bf16.mxu0 0
    %110 = vmatpush1.bf16.msra.mxu0 %v72
    %111 = vmatprep.subr.bf16.mxu0 0
    %112 = vmatpush1.bf16.msra.mxu0 %v103
    %113 = vmatprep.subr.bf16.mxu0 0
    %114 = vmatpush1.bf16.msra.mxu0 0
    %115 = vmatprep.subr.bf16.mxu0 0
    %116 = vmatpush1.bf16.msra.mxu0 0
    %117 = vmatprep.subr.bf16.mxu0 0
    %118 = vmatpush1.bf16.msra.mxu0 0
    %119 = vmatprep.subr.bf16.mxu0 0
    %120 = vmatpush1.bf16.msra.mxu0 0
    %121 = vmatprep.subr.bf16.mxu0 0
    %122 = vmatpush1.bf16.msra.mxu0 0
    %123 = vmatprep.subr.bf16.mxu0 0
    %124 = vmatpush1.bf16.msra.mxu0 0
    %125 = vmatprep.subr.bf16.mxu0 0
    %126 = vmatpush1.bf16.msra.mxu0 0
    %127 = vmatprep.subr.bf16.mxu0 0
    %128 = vmatpush1.bf16.msra.mxu0 0
    %129 = vmatprep.subr.bf16.mxu0 0
    %130 = vmatpush1.bf16.msra.mxu0 0
    %131 = vmatprep.subr.bf16.mxu0 0
    %132 = vmatpush1.bf16.msra.mxu0 0
    %133 = vmatprep.subr.bf16.mxu0 0
    %134 = vmatpush1.bf16.msra.mxu0 0
    %135 = vmatprep.subr.bf16.mxu0 0
    %136 = vmatpush1.bf16.msra.mxu0 0
    %137 = vmatprep.mubr.bf16.mxu0 0
    %138 = vmatmul.mubr.bf16.gmra.mrb[0].mxu0 %v96
    %v139 = vpop.f32.mrb[0].mxu0
    %v140 = vadd.f32 0.0, %v139
    %v141 = vpop.f32.mrb[0].mxu0
    %v142 = vpop.f32.mrb[0].mxu0
    %v143 = vadd.f32 0.0, %v142
    %v144 = vpop.f32.mrb[0].mxu0
    %145 = vmatprep.mubr.bf16.mxu0 0
    %146 = vmatmul.mubr.bf16.gmra.mrb[0].mxu0 %v99
    %v147 = vpop.f32.mrb[0].mxu0
    %v148 = vadd.f32 0.0, %v147
    %v149 = vpop.f32.mrb[0].mxu0
    %v150 = vpop.f32.mrb[0].mxu0
    %v151 = vadd.f32 0.0, %v150
    %v152 = vpop.f32.mrb[0].mxu0
    %153 = vdwg.mxu0
    %v158 = vunpack.c.l.b16 %v74
    %v159 = vunpack.c.l.b16 %v75
    %v160 = vunpack.c.l.b16 %v76
    %v161 = vunpack.c.l.b16 %v77
    %v162 = vpack.c.b16 %v159, %v158
    %v163 = vpack.c.b16 %v161, %v160
    %v166 = vunpack.c.l.b16 %v78
    %v167 = vunpack.c.l.b16 %v79
    %v168 = vpack.c.b16 %v167, %v166
    %vm169 = vcmask 80896
    %v171 = vsel %vm169, %v162, 0
    %v174 = vsel %vm169, %v163, 0
    %vm176 = vcmask 1044480
    %v178 = vsel %vm176, %v168, 0
    %180 = vmatprep.subr.bf16.mxu0 0
    %181 = vmatpush1.bf16.msra.mxu0 %v178
    %182 = vmatprep.subr.bf16.mxu0 0
    %183 = vmatpush1.bf16.msra.mxu0 0
    %184 = vmatprep.subr.bf16.mxu0 0
    %185 = vmatpush1.bf16.msra.mxu0 0
    %186 = vmatprep.subr.bf16.mxu0 0
    %187 = vmatpush1.bf16.msra.mxu0 0
    %188 = vmatprep.subr.bf16.mxu0 0
    %189 = vmatpush1.bf16.msra.mxu0 0
    %190 = vmatprep.subr.bf16.mxu0 0
    %191 = vmatpush1.bf16.msra.mxu0 0
    %192 = vmatprep.subr.bf16.mxu0 0
    %193 = vmatpush1.bf16.msra.mxu0 0
    %194 = vmatprep.subr.bf16.mxu0 0
    %195 = vmatpush1.bf16.msra.mxu0 0
    %196 = vmatprep.subr.bf16.mxu0 0
    %197 = vmatpush1.bf16.msra.mxu0 0
    %198 = vmatprep.subr.bf16.mxu0 0
    %199 = vmatpush1.bf16.msra.mxu0 0
    %200 = vmatprep.subr.bf16.mxu0 0
    %201 = vmatpush1.bf16.msra.mxu0 0
    %202 = vmatprep.subr.bf16.mxu0 0
    %203 = vmatpush1.bf16.msra.mxu0 0
    %204 = vmatprep.subr.bf16.mxu0 0
    %205 = vmatpush1.bf16.msra.mxu0 0
    %206 = vmatprep.subr.bf16.mxu0 0
    %207 = vmatpush1.bf16.msra.mxu0 0
    %208 = vmatprep.subr.bf16.mxu0 0
    %209 = vmatpush1.bf16.msra.mxu0 0
    %210 = vmatprep.subr.bf16.mxu0 0
    %211 = vmatpush1.bf16.msra.mxu0 0
    %212 = vmatprep.mubr.bf16.mxu0 0
    %213 = vmatmul.mubr.bf16.gmra.mrb[0].mxu0 %v171
    %v214 = vpop.f32.mrb[0].mxu0
    %v215 = vadd.f32 %v140, %v214
    %v216 = vpop.f32.mrb[0].mxu0
    %v217 = vpop.f32.mrb[0].mxu0
    %v218 = vadd.f32 %v143, %v217
    %v219 = vpop.f32.mrb[0].mxu0
    %220 = vmatprep.mubr.bf16.mxu0 0
    %221 = vmatmul.mubr.bf16.gmra.mrb[0].mxu0 %v174
    %v222 = vpop.f32.mrb[0].mxu0
    %v223 = vadd.f32 %v148, %v222
    %v224 = vpop.f32.mrb[0].mxu0
    %v225 = vpop.f32.mrb[0].mxu0
    %v226 = vadd.f32 %v151, %v225
    %v227 = vpop.f32.mrb[0].mxu0
    %228 = vdwg.mxu0
    %v229 = vld [vmem:[%s4] sm:$0xff]
    %v230 = vld [vmem:[%s4 + $0x8] sm:$0xff]
    %v231 = vld [vmem:[%s4 + $0x10] sm:$0xff]
    %v232 = vld [vmem:[%s4 + $0x18] sm:$0xff]
    %234 = vset.pattern.permute.xlu0 0
    %235 = vperm.xlu0 %234, %v229
    %v236 = vpop.permute.xlu0 %235
    %239 = vset.pattern.permute.xlu0 0
    %240 = vperm.xlu0 %239, %v230
    %v241 = vpop.permute.xlu0 %240
    %244 = vset.pattern.permute.xlu0 0
    %245 = vperm.xlu0 %244, %v231
    %v246 = vpop.permute.xlu0 %245
    %249 = vset.pattern.permute.xlu0 0
    %250 = vperm.xlu0 %249, %v232
    %v251 = vpop.permute.xlu0 %250
    %v253 = vadd.f32 %v215, %v236
    %v254 = vadd.f32 %v218, %v241
    %v255 = vadd.f32 %v223, %v246
    %v256 = vadd.f32 %v226, %v251
    %v257 = vmax.f32 %v253, 0.0
    %v258 = vmax.f32 %v254, 0.0
    %v259 = vmax.f32 %v255, 0.0
    %v260 = vmax.f32 %v256, 0.0
    %v261 = vld [vmem:[%s5] sm:$0xf]
    %v262 = vld [vmem:[%s5 + $0x4] sm:$0xf]
    %v263 = vld [vmem:[%s5 + $0x8] sm:$0xf]
    %v264 = vld [vmem:[%s5 + $0xc] sm:$0xf]
    %v265 = vpack.c.bf16 %v258, %v257
    %v266 = vpack.c.bf16 %v260, %v259
    %v267 = vld [vmem:[%s6] sm:$0xff]
    %v268 = vld [vmem:[%s6 + $0x8] sm:$0xff]
    %v269 = vld [vmem:[%s6 + $0x10] sm:$0xff]
    %v270 = vld [vmem:[%s6 + $0x18] sm:$0xff]
    %272 = vset.pattern.permute.xlu0 0
    %273 = vperm.xlu0 %272, %v267
    %v274 = vpop.permute.xlu0 %273
    %277 = vset.pattern.permute.xlu0 0
    %278 = vperm.xlu0 %277, %v268
    %v279 = vpop.permute.xlu0 %278
    %282 = vset.pattern.permute.xlu0 0
    %283 = vperm.xlu0 %282, %v269
    %v284 = vpop.permute.xlu0 %283
    %287 = vset.pattern.permute.xlu0 0
    %288 = vperm.xlu0 %287, %v270
    %v289 = vpop.permute.xlu0 %288
    %v295 = vunpack.c.l.b16 %v261
    %v296 = vunpack.c.l.b16 %v262
    %v297 = vunpack.c.l.b16 %v263
    %v298 = vunpack.c.l.b16 %v264
    %v299 = vpack.c.b16 %v296, %v295
    %v300 = vpack.c.b16 %v298, %v297
    %vm301 = vcmask 261120
    %v303 = vsel %vm301, %v299, 0
    %v306 = vsel %vm301, %v300, 0
    %308 = vmatprep.subr.bf16.mxu0 0
    %309 = vmatpush1.bf16.msra.mxu0 %v265
    %310 = vmatprep.subr.bf16.mxu0 0
    %311 = vmatpush1.bf16.msra.mxu0 %v266
    %312 = vmatprep.subr.bf16.mxu0 0
    %313 = vmatpush1.bf16.msra.mxu0 0
    %314 = vmatprep.subr.bf16.mxu0 0
    %315 = vmatpush1.bf16.msra.mxu0 0
    %316 = vmatprep.subr.bf16.mxu0 0
    %317 = vmatpush1.bf16.msra.mxu0 0
    %318 = vmatprep.subr.bf16.mxu0 0
    %319 = vmatpush1.bf16.msra.mxu0 0
    %320 = vmatprep.subr.bf16.mxu0 0
    %321 = vmatpush1.bf16.msra.mxu0 0
    %322 = vmatprep.subr.bf16.mxu0 0
    %323 = vmatpush1.bf16.msra.mxu0 0
    %324 = vmatprep.subr.bf16.mxu0 0
    %325 = vmatpush1.bf16.msra.mxu0 0
    %326 = vmatprep.subr.bf16.mxu0 0
    %327 = vmatpush1.bf16.msra.mxu0 0
    %328 = vmatprep.subr.bf16.mxu0 0
    %329 = vmatpush1.bf16.msra.mxu0 0
    %330 = vmatprep.subr.bf16.mxu0 0
    %331 = vmatpush1.bf16.msra.mxu0 0
    %332 = vmatprep.subr.bf16.mxu0 0
    %333 = vmatpush1.bf16.msra.mxu0 0
    %334 = vmatprep.subr.bf16.mxu0 0
    %335 = vmatpush1.bf16.msra.mxu0 0
    %336 = vmatprep.subr.bf16.mxu0 0
    %337 = vmatpush1.bf16.msra.mxu0 0
    %338 = vmatprep.subr.bf16.mxu0 0
    %339 = vmatpush1.bf16.msra.mxu0 0
    %340 = vmatprep.mubr.bf16.mxu0 0
    %341 = vmatmul.mubr.bf16.gmra.mrb[0].mxu0 %v303
    %v342 = vpop.f32.mrb[0].mxu0
    %v343 = vadd.f32 %v274, %v342
    %v344 = vpop.f32.mrb[0].mxu0
    %v345 = vpop.f32.mrb[0].mxu0
    %v346 = vadd.f32 %v279, %v345
    %v347 = vpop.f32.mrb[0].mxu0
    %348 = vmatprep.mubr.bf16.mxu0 0
    %349 = vmatmul.mubr.bf16.gmra.mrb[0].mxu0 %v306
    %v350 = vpop.f32.mrb[0].mxu0
    %v351 = vadd.f32 %v284, %v350
    %v352 = vpop.f32.mrb[0].mxu0
    %v353 = vpop.f32.mrb[0].mxu0
    %v354 = vadd.f32 %v289, %v353
    %v355 = vpop.f32.mrb[0].mxu0
    %356 = vdwg.mxu0
    %v357 = vmax.f32 %v343, 0.0
    %v358 = vmax.f32 %v346, 0.0
    %v359 = vmax.f32 %v351, 0.0
    %v360 = vmax.f32 %v354, 0.0
    %v361 = vld [vmem:[%s7] sm:$0x1]
    %v362 = vpack.c.bf16 %v358, %v357
    %v363 = vpack.c.bf16 %v360, %v359
    %v364 = vld [vmem:[#allocation2] sm:$0x1]
    %366 = vset.pattern.permute.xlu0 0
    %367 = vperm.xlu0 %366, %v364
    %v368 = vpop.permute.xlu0 %367
    %v370 = vlaneseq
    %v371 = vshrl.u32 %v370, 7
    %v372 = vsub.s32 0, %v371
    %v373 = vrot.slane %v368, %v372
    %v375 = vsel %vm301, %v361, 0
    %377 = vmatprep.subr.bf16.mxu0 0
    %378 = vmatpush1.bf16.msra.mxu0 %v362
    %379 = vmatprep.subr.bf16.mxu0 0
    %380 = vmatpush1.bf16.msra.mxu0 %v363
    %381 = vmatprep.subr.bf16.mxu0 0
    %382 = vmatpush1.bf16.msra.mxu0 0
    %383 = vmatprep.subr.bf16.mxu0 0
    %384 = vmatpush1.bf16.msra.mxu0 0
    %385 = vmatprep.subr.bf16.mxu0 0
    %386 = vmatpush1.bf16.msra.mxu0 0
    %387 = vmatprep.subr.bf16.mxu0 0
    %388 = vmatpush1.bf16.msra.mxu0 0
    %389 = vmatprep.subr.bf16.mxu0 0
    %390 = vmatpush1.bf16.msra.mxu0 0
    %391 = vmatprep.subr.bf16.mxu0 0
    %392 = vmatpush1.bf16.msra.mxu0 0
    %393 = vmatprep.subr.bf16.mxu0 0
    %394 = vmatpush1.bf16.msra.mxu0 0
    %395 = vmatprep.subr.bf16.mxu0 0
    %396 = vmatpush1.bf16.msra.mxu0 0
    %397 = vmatprep.subr.bf16.mxu0 0
    %398 = vmatpush1.bf16.msra.mxu0 0
    %399 = vmatprep.subr.bf16.mxu0 0
    %400 = vmatpush1.bf16.msra.mxu0 0
    %401 = vmatprep.subr.bf16.mxu0 0
    %402 = vmatpush1.bf16.msra.mxu0 0
    %403 = vmatprep.subr.bf16.mxu0 0
    %404 = vmatpush1.bf16.msra.mxu0 0
    %405 = vmatprep.subr.bf16.mxu0 0
    %406 = vmatpush1.bf16.msra.mxu0 0
    %407 = vmatprep.subr.bf16.mxu0 0
    %408 = vmatpush1.bf16.msra.mxu0 0
    %409 = vmatprep.mubr.bf16.mxu0 0
    %410 = vmatmul.mubr.bf16.gmra.mrb[0].mxu0 %v375
    %v411 = vpop.f32.mrb[0].mxu0
    %v412 = vadd.f32 %v373, %v411
    %v413 = vpop.f32.mrb[0].mxu0
    %v414 = vpop.f32.mrb[0].mxu0
    %v415 = vpop.f32.mrb[0].mxu0
    %416 = vdwg.mxu0
    %417 = vst [vmem:[#allocation3] sm:$0x1] %v412
    // Predicated region
    $region38: #{tpu_custom_call.1} parent=1 // pred_check
      _
    $region39: #{tpu_custom_call.1} parent=1 // pred_check_branch
      %419 = sbr.rel (0) target = $region41
    $region40: #{tpu_custom_call.1} parent=1 // pred_region
      %s421 = ssub.s32 16, 16
      %422 = vsyncadd [#allocation4], %s421
      %s424 = sshll.u32 [#allocation3], 4
      %s425 = int_to_ptr.vmem [resolvable:$true] %s424
      %427 = dma.vmem_to_hbm [thread:$0]  %s425, 16, %s9, [#allocation4]
    $region41: #{tpu_custom_call.1} parent=1 // pred_fallthru
      _
    // Predicated region
    $region42: #{tpu_custom_call.1} parent=1 // pred_check
      _
    $region43: #{tpu_custom_call.1} parent=1 // pred_check_branch
      %429 = sbr.rel (0) target = $region45
    $region44: #{tpu_custom_call.1} parent=1 // pred_region
      %430 = dma.done [#allocation4], 16
    $region45: #{tpu_custom_call.1} parent=1 // pred_fallthru
      _
    %431 = vsyncpa [#allocation4], 1

</llo_original>
